<compile_context>
chip_gen: v7x
topology: tpu7x:2x2x1
jax: 0.10.0
libtpu: 0.0.40
codegen_flags: <defaults>
</compile_context>

<pallas_src>
import numpy as np
import jax
import jax.numpy as jnp
from jax.experimental import pallas as pl
from jax.experimental.pallas import tpu as pltpu

LEAKY_SLOPE = 0.01            # nn.LeakyReLU default
LN_EPS = 1e-5                 # nn.LayerNorm default
VMEM_LIMIT = 32 * 1024 * 1024  # safe on v5e/v6e/v7x, well above our footprint


# ----------------------------------------------------------------------------
# Kernel 1: LayerNorm(latent_dim) + Linear(latent_dim -> latent_dim*seq_len)
# ----------------------------------------------------------------------------
def _lnorm_linear_kernel(x_ref, g_ref, beta_ref, w_ref, wb_ref, o_ref):
    x = x_ref[...]                                              # (tm, D) f32
    mu = jnp.mean(x, axis=-1, keepdims=True)
    var = jnp.mean(jnp.square(x - mu), axis=-1, keepdims=True)  # biased var (torch)
    xn = (x - mu) * jax.lax.rsqrt(var + LN_EPS)
    y = (xn * g_ref[...] + beta_ref[...]).astype(jnp.bfloat16)  # bf16 MXU operand
    o_ref[...] = (jnp.dot(y, w_ref[...], preferred_element_type=jnp.float32)
                  + wb_ref[...])


def lnorm_linear(x, gamma, beta, w, wb):
    B, D = x.shape
    DS = w.shape[1]
    # Batch tile: largest MXU-friendly tile dividing B; whole batch at tiny B.
    tm = B
    for cand in (256, 128, 64, 32, 16, 8):
        if B % cand == 0:
            tm = cand
            break
    return pl.pallas_call(
        _lnorm_linear_kernel,
        out_shape=jax.ShapeDtypeStruct((B, DS), jnp.float32),
        grid=(B // tm,),
        in_specs=[
            pl.BlockSpec((tm, D), lambda i: (i, 0)),
            pl.BlockSpec((1, D), lambda i: (0, 0)),
            pl.BlockSpec((1, D), lambda i: (0, 0)),
            pl.BlockSpec((D, DS), lambda i: (0, 0)),
            pl.BlockSpec((1, DS), lambda i: (0, 0)),
        ],
        out_specs=pl.BlockSpec((tm, DS), lambda i: (i, 0)),     # lane-dense (tm, D*S)
        compiler_params=pltpu.CompilerParams(
            dimension_semantics=("parallel",),
            vmem_limit_bytes=VMEM_LIMIT),
    )(x, gamma, beta, w, wb)


# ----------------------------------------------------------------------------
# Kernel 2: fused tail = 5 x ResidualBlock + Conv1d(D->4, k=1) + softmax(dim=1),
#           lane-batched: Bt samples adjacent along the lane axis per grid step.
# ----------------------------------------------------------------------------
def _leaky(x):
    return jnp.maximum(x, LEAKY_SLOPE * x)      # 2 VPU ops (valid for slope in (0,1))


def _generator_tail_kernel(x_ref, mask_ref, w1_ref, b1_ref, w2_ref, b2_ref,
                           ow_ref, ob_ref, o_ref, xcol_ref):
    D, N = x_ref.shape                           # N = Bt * S (lane-batched)
    NB = w1_ref.shape[0]
    zpad = jnp.zeros((D, 2), jnp.float32)

    def tap_window(a, k):
        # window_k[:, c] = a[:, c + k - 2] inside the sample, 0 outside (= conv pad=2).
        if k == 2:
            return a
        if k < 2:
            w = jnp.concatenate([zpad[:, :2 - k], a[:, :N - (2 - k)]], axis=1)
        else:
            w = jnp.concatenate([a[:, k - 2:], zpad[:, :k - 2]], axis=1)
        return w * mask_ref[k]                   # zero taps that crossed a sample edge

    def conv5(a, w_flat, b):
        # Conv1d(k=5, padding=2) over Bt lane-adjacent samples as ONE MXU matmul
        # (K = 5*D, N = Bt*S); im2col rows are stored straight into a VMEM scratch.
        for k in range(5):                       # static: 5 taps
            xcol_ref[k * D:(k + 1) * D, :] = tap_window(a, k).astype(jnp.bfloat16)
        return jnp.dot(w_flat, xcol_ref[...],
                       preferred_element_type=jnp.float32) + b

    def block(i, h):
        # PyTorch ResidualBlock: lnorm_1/lnorm_2 outputs are dead code -> skipped.
        t = conv5(_leaky(h), w1_ref[i], b1_ref[i])
        t = conv5(_leaky(t), w2_ref[i], b2_ref[i])
        return h + 0.3 * t

    h = jax.lax.fori_loop(0, NB, block, x_ref[...])   # rolled loop: bounded live ranges

    # conv_out (1x1) + softmax over channels
    logits = jnp.dot(ow_ref[...], h.astype(jnp.bfloat16),
                     preferred_element_type=jnp.float32) + ob_ref[...]
    m = jnp.max(logits, axis=0, keepdims=True)
    e = jnp.exp(logits - m)
    inv = pl.reciprocal(jnp.sum(e, axis=0, keepdims=True), approx=True)   # EUP slot
    o_ref[...] = e * inv                          # lane-dense (C, Bt*S) store


def _pick_bt(B, S):
    """Samples per tail grid step: smallest Bt with Bt*S a multiple of 128 (unmasked
    lane-dense stores, full-width MXU N) so the grid keeps multiple 'parallel' steps
    for v7x's 2 TensorCores; falls back to the whole batch at tiny sizes."""
    for bt in range(1, B + 1):
        if B % bt == 0 and (bt * S) % 128 == 0 and bt * S <= 2048:
            return bt
    return B


def _tap_masks(S, bt):
    """(5, 1, bt*S) 0/1 masks: im2col tap k is valid at in-sample position s iff
    0 <= s + k - 2 < S (samples are adjacent along the lane axis)."""
    s_in = np.tile(np.arange(S), bt)
    m = np.zeros((5, 1, bt * S), np.float32)
    for k in range(5):
        lo, hi = max(0, 2 - k), S - max(0, k - 2)
        m[k, 0] = ((s_in >= lo) & (s_in < hi)).astype(np.float32)
    return jnp.asarray(m)


def generator_tail(x_slab, w1, b1, w2, b2, out_w, out_b, *, seq_len, batch):
    D, BS = x_slab.shape
    S, B = seq_len, batch
    NB = w1.shape[0]
    C = out_w.shape[0]
    bt = _pick_bt(B, S)
    nblk = bt * S
    masks = _tap_masks(S, bt)
    return pl.pallas_call(
        _generator_tail_kernel,
        out_shape=jax.ShapeDtypeStruct((C, BS), jnp.float32),
        grid=(B // bt,),
        in_specs=[
            pl.BlockSpec((D, nblk), lambda i: (0, i)),            # activation slab (per step)
            pl.BlockSpec((5, 1, nblk), lambda i: (0, 0, 0)),      # tap masks (resident)
            pl.BlockSpec((NB, D, 5 * D), lambda i: (0, 0, 0)),    # conv_1 weights (resident)
            pl.BlockSpec((NB, D, 1), lambda i: (0, 0, 0)),        # conv_1 biases
            pl.BlockSpec((NB, D, 5 * D), lambda i: (0, 0, 0)),    # conv_2 weights (resident)
            pl.BlockSpec((NB, D, 1), lambda i: (0, 0, 0)),        # conv_2 biases
            pl.BlockSpec((C, D), lambda i: (0, 0)),               # conv_out weight
            pl.BlockSpec((C, 1), lambda i: (0, 0)),               # conv_out bias
        ],
        out_specs=pl.BlockSpec((C, nblk), lambda i: (0, i)),      # lane-dense output slab
        scratch_shapes=[pltpu.VMEM((5 * D, nblk), jnp.bfloat16)], # im2col scratch
        compiler_params=pltpu.CompilerParams(
            dimension_semantics=("parallel",),                    # megacore on v7x
            vmem_limit_bytes=VMEM_LIMIT),
    )(x_slab, masks, w1, b1, w2, b2, out_w, out_b)


# ----------------------------------------------------------------------------
# Parameters: synthetic weights in PyTorch layouts + one-time kernel relayout
# ----------------------------------------------------------------------------
def init_params(key, latent_dim, seq_len, n_blocks=5):
    """Synthetic parameters stored in the exact PyTorch parameter shapes."""
    D, S = latent_dim, seq_len
    ks = jax.random.split(key, 4 + 4 * n_blocks)
    scale = 0.05
    p = {
        "ln_w": jnp.ones((D,), jnp.float32),                  # LayerNorm default affine
        "ln_b": jnp.zeros((D,), jnp.float32),
        "lin_w": scale * jax.random.normal(ks[0], (D * S, D), jnp.float32),  # Linear (out,in)
        "lin_b": scale * jax.random.normal(ks[1], (D * S,), jnp.float32),
        "out_w": scale * jax.random.normal(ks[2], (4, D, 1), jnp.float32),   # Conv1d k=1
        "out_b": scale * jax.random.normal(ks[3], (4,), jnp.float32),
        "blocks": [],
    }
    for i in range(n_blocks):
        k0, k1, k2, k3 = ks[4 + 4 * i: 8 + 4 * i]
        p["blocks"].append({
            "w1": scale * jax.random.normal(k0, (D, D, 5), jnp.float32),     # Conv1d (out,in,5)
            "b1": scale * jax.random.normal(k1, (D,), jnp.float32),
            "w2": scale * jax.random.normal(k2, (D, D, 5), jnp.float32),
            "b2": scale * jax.random.normal(k3, (D,), jnp.float32),
        })
    return p


def prepare_kernel_params(p):
    """Host-side relayout + bf16 cast of the MXU operands.  Call ONCE (hoisted out of
    the forward), not per call."""
    D = p["ln_w"].shape[0]

    def flat_conv_w(w):   # (O, I, 5) -> (O, 5*I) with index = k*I + i  (im2col order)
        return jnp.transpose(w, (0, 2, 1)).reshape(w.shape[0], -1).astype(jnp.bfloat16)

    return {
        "ln_g": p["ln_w"].reshape(1, D),
        "ln_b": p["ln_b"].reshape(1, D),
        "lin_w": p["lin_w"].T.astype(jnp.bfloat16),              # (D, D*S) pre-transposed
        "lin_b": p["lin_b"].reshape(1, -1),                      # (1, D*S) f32
        "w1": jnp.stack([flat_conv_w(b["w1"]) for b in p["blocks"]]),   # (NB, D, 5D) bf16
        "b1": jnp.stack([b["b1"].reshape(D, 1) for b in p["blocks"]]),  # (NB, D, 1) f32
        "w2": jnp.stack([flat_conv_w(b["w2"]) for b in p["blocks"]]),
        "b2": jnp.stack([b["b2"].reshape(D, 1) for b in p["blocks"]]),
        "out_w": p["out_w"][:, :, 0].astype(jnp.bfloat16),       # (4, D) bf16
        "out_b": p["out_b"].reshape(-1, 1),                      # (4, 1) f32
    }


def generator_forward(x, kp):
    B, D = x.shape
    DS = kp["lin_w"].shape[1]
    S = DS // D
    C = kp["out_w"].shape[0]
    h = lnorm_linear(x, kp["ln_g"], kp["ln_b"], kp["lin_w"], kp["lin_b"])   # (B, D*S)
    # torch.reshape -> (B, D, S), then fold the batch into the LANE axis of the tail:
    # slab[d, b*S + s] = h[b, d, s]   (cheap XLA transpose, done once per forward)
    slab = h.reshape(B, D, S).transpose(1, 0, 2).reshape(D, B * S)
    out = generator_tail(slab, kp["w1"], kp["b1"], kp["w2"], kp["b2"],
                         kp["out_w"], kp["out_b"], seq_len=S, batch=B)      # (C, B*S)
    return out.reshape(C, B, S).transpose(1, 0, 2)                          # (B, 4, S)


# ----------------------------------------------------------------------------
# Pure-JAX f32 reference (directly mirrors the PyTorch module, torch weight layouts)
# ----------------------------------------------------------------------------
def _conv1d_ref(h, w, b):
    # h: (B, D_in, S), w: (D_out, D_in, 5), b: (D_out,)  -- Conv1d, padding=2
    B, _, S = h.shape
    hp = jnp.pad(h, ((0, 0), (0, 0), (2, 2)))
    out = jnp.broadcast_to(b[None, :, None], (B, w.shape[0], S)).astype(jnp.float32)
    for k in range(5):
        out = out + jnp.einsum("oi,bis->bos", w[:, :, k], hp[:, :, k:k + S])
    return out


def generator_reference(x, p):
    B, D = x.shape
    S = p["lin_w"].shape[0] // D
    mu = jnp.mean(x, axis=-1, keepdims=True)
    var = jnp.mean((x - mu) ** 2, axis=-1, keepdims=True)
    y = (x - mu) / jnp.sqrt(var + LN_EPS) * p["ln_w"][None, :] + p["ln_b"][None, :]
    h = (y @ p["lin_w"].T + p["lin_b"][None, :]).reshape(B, D, S)
    for blk in p["blocks"]:
        t = jnp.where(h > 0, h, LEAKY_SLOPE * h)
        t = _conv1d_ref(t, blk["w1"], blk["b1"])
        t = jnp.where(t > 0, t, LEAKY_SLOPE * t)
        t = _conv1d_ref(t, blk["w2"], blk["b2"])
        h = h + 0.3 * t
    logits = jnp.einsum("od,bds->bos", p["out_w"][:, :, 0], h) + p["out_b"][None, :, None]
    return jax.nn.softmax(logits, axis=1)


if __name__ == "__main__":
    B, D, S = 2, 32, 16   # batch, latent_dim, seq_len (small test shapes)
    key = jax.random.PRNGKey(0)
    kx, kw = jax.random.split(key)
    x = jax.random.normal(kx, (B, D), jnp.float32)
    params = init_params(kw, D, S)
    kparams = prepare_kernel_params(params)      # weight relayout hoisted out of forward

    fwd = jax.jit(generator_forward)
    y = jax.block_until_ready(fwd(x, kparams))

    assert y.shape == (B, 4, S), y.shape
    # softmax over channels must sum to ~1 (approx reciprocal in the kernel)
    assert jnp.allclose(jnp.sum(y, axis=1), 1.0, atol=2e-2)
    # cross-check against a pure-f32 JAX reference of the PyTorch module
    # (kernel uses bf16 MXU operands -> loosened tolerance)
    y_ref = generator_reference(x, params)
    err = float(jnp.max(jnp.abs(y - y_ref)))
    assert err < 2e-2, err
    print("KERNEL_OK")
</pallas_src>

<mosaic_0001>
module attributes {stable_mosaic.version = 11 : i64} {
  func.func @_lnorm_linear_kernel(%arg0: i32, %arg1: memref<2x32xf32, #tpu.memory_space<vmem>>, %arg2: memref<1x32xf32, #tpu.memory_space<vmem>>, %arg3: memref<1x32xf32, #tpu.memory_space<vmem>>, %arg4: memref<32x512xbf16, #tpu.memory_space<vmem>>, %arg5: memref<1x512xf32, #tpu.memory_space<vmem>>, %arg6: memref<2x512xf32, #tpu.memory_space<vmem>>) attributes {dimension_semantics = [#tpu.dimension_semantics<parallel>], iteration_bounds = array<i64: 1>, scalar_prefetch = 0 : i64, scratch_operands = 0 : i64, tpu.core_type = #tpu.core_type<tc>, window_params = [{transform_indices = @transform_0, window_bounds = array<i64: 2, 32>}, {pipeline_mode = #tpu.pipeline_mode<synchronous>, transform_indices = @transform_1, window_bounds = array<i64: 1, 32>}, {pipeline_mode = #tpu.pipeline_mode<synchronous>, transform_indices = @transform_2, window_bounds = array<i64: 1, 32>}, {pipeline_mode = #tpu.pipeline_mode<synchronous>, transform_indices = @transform_3, window_bounds = array<i64: 32, 512>}, {pipeline_mode = #tpu.pipeline_mode<synchronous>, transform_indices = @transform_4, window_bounds = array<i64: 1, 512>}, {transform_indices = @transform_5, window_bounds = array<i64: 2, 512>}]} {
    %c0 = arith.constant 0 : index
    %c0_0 = arith.constant 0 : index
    %0 = vector.load %arg1[%c0, %c0_0] : memref<2x32xf32, #tpu.memory_space<vmem>>, vector<2x32xf32>
    %cst = arith.constant dense<0.000000e+00> : vector<2xf32>
    %1 = vector.multi_reduction <add>, %0, %cst [1] : vector<2x32xf32> to vector<2xf32>
    %2 = vector.shape_cast %1 : vector<2xf32> to vector<2x1xf32>
    %cst_1 = arith.constant 3.200000e+01 : f32
    %3 = vector.broadcast %cst_1 : f32 to vector<2x1xf32>
    %4 = arith.divf %2, %3 : vector<2x1xf32>
    %5 = vector.broadcast %4 : vector<2x1xf32> to vector<2x32xf32>
    %6 = arith.subf %0, %5 : vector<2x32xf32>
    %7 = arith.mulf %6, %6 : vector<2x32xf32>
    %cst_2 = arith.constant dense<0.000000e+00> : vector<2xf32>
    %8 = vector.multi_reduction <add>, %7, %cst_2 [1] : vector<2x32xf32> to vector<2xf32>
    %9 = vector.shape_cast %8 : vector<2xf32> to vector<2x1xf32>
    %cst_3 = arith.constant 3.200000e+01 : f32
    %10 = vector.broadcast %cst_3 : f32 to vector<2x1xf32>
    %11 = arith.divf %9, %10 : vector<2x1xf32>
    %12 = vector.broadcast %4 : vector<2x1xf32> to vector<2x32xf32>
    %13 = arith.subf %0, %12 : vector<2x32xf32>
    %cst_4 = arith.constant 9.99999974E-6 : f32
    %14 = vector.broadcast %cst_4 : f32 to vector<2x1xf32>
    %15 = arith.addf %11, %14 : vector<2x1xf32>
    %16 = math.rsqrt %15 : vector<2x1xf32>
    %17 = vector.broadcast %16 : vector<2x1xf32> to vector<2x32xf32>
    %18 = arith.mulf %13, %17 : vector<2x32xf32>
    %c0_5 = arith.constant 0 : index
    %c0_6 = arith.constant 0 : index
    %19 = vector.load %arg2[%c0_5, %c0_6] : memref<1x32xf32, #tpu.memory_space<vmem>>, vector<1x32xf32>
    %20 = vector.broadcast %19 : vector<1x32xf32> to vector<2x32xf32>
    %21 = arith.mulf %18, %20 : vector<2x32xf32>
    %c0_7 = arith.constant 0 : index
    %c0_8 = arith.constant 0 : index
    %22 = vector.load %arg3[%c0_7, %c0_8] : memref<1x32xf32, #tpu.memory_space<vmem>>, vector<1x32xf32>
    %23 = vector.broadcast %22 : vector<1x32xf32> to vector<2x32xf32>
    %24 = arith.addf %21, %23 : vector<2x32xf32>
    %25 = arith.truncf %24 : vector<2x32xf32> to vector<2x32xbf16>
    %c0_9 = arith.constant 0 : index
    %c0_10 = arith.constant 0 : index
    %26 = vector.load %arg4[%c0_9, %c0_10] : memref<32x512xbf16, #tpu.memory_space<vmem>>, vector<32x512xbf16>
    %cst_11 = arith.constant dense<0.000000e+00> : vector<2x512xf32>
    %27 = tpu.matmul %25, %26, %cst_11 {dimension_numbers = #tpu.dot_dimension_numbers<[1], [0], [0], [1], [0, 0, 1, 1], [], []>} : vector<2x32xbf16>, vector<32x512xbf16>, vector<2x512xf32> -> vector<2x512xf32>
    %c0_12 = arith.constant 0 : index
    %c0_13 = arith.constant 0 : index
    %28 = vector.load %arg5[%c0_12, %c0_13] : memref<1x512xf32, #tpu.memory_space<vmem>>, vector<1x512xf32>
    %29 = vector.broadcast %28 : vector<1x512xf32> to vector<2x512xf32>
    %30 = arith.addf %27, %29 : vector<2x512xf32>
    %c0_14 = arith.constant 0 : index
    %c0_15 = arith.constant 0 : index
    %31 = vector.load %arg6[%c0_14, %c0_15] : memref<2x512xf32, #tpu.memory_space<vmem>>, vector<2x512xf32>
    tpu.vector_store %arg6[%c0_14, %c0_15], %30 {strides = array<i32>} : memref<2x512xf32, #tpu.memory_space<vmem>>, vector<2x512xf32>,
    return
  }
  func.func @transform_0(%arg0: i32) -> (i32, i32) {
    %c0_i32 = arith.constant 0 : i32
    %c0_i32_0 = arith.constant 0 : i32
    return %arg0, %c0_i32 : i32, i32
  }
  func.func @transform_1(%arg0: i32) -> (i32, i32) {
    %c0_i32 = arith.constant 0 : i32
    %c0_i32_0 = arith.constant 0 : i32
    %c0_i32_1 = arith.constant 0 : i32
    return %c0_i32, %c0_i32_0 : i32, i32
  }
  func.func @transform_2(%arg0: i32) -> (i32, i32) {
    %c0_i32 = arith.constant 0 : i32
    %c0_i32_0 = arith.constant 0 : i32
    %c0_i32_1 = arith.constant 0 : i32
    return %c0_i32, %c0_i32_0 : i32, i32
  }
  func.func @transform_3(%arg0: i32) -> (i32, i32) {
    %c0_i32 = arith.constant 0 : i32
    %c0_i32_0 = arith.constant 0 : i32
    %c0_i32_1 = arith.constant 0 : i32
    return %c0_i32, %c0_i32_0 : i32, i32
  }
  func.func @transform_4(%arg0: i32) -> (i32, i32) {
    %c0_i32 = arith.constant 0 : i32
    %c0_i32_0 = arith.constant 0 : i32
    %c0_i32_1 = arith.constant 0 : i32
    return %c0_i32, %c0_i32_0 : i32, i32
  }
  func.func @transform_5(%arg0: i32) -> (i32, i32) {
    %c0_i32 = arith.constant 0 : i32
    %c0_i32_0 = arith.constant 0 : i32
    return %arg0, %c0_i32 : i32, i32
  }
}

module attributes {stable_mosaic.version = 11 : i64} {
  func.func @_generator_tail_kernel(%arg0: i32, %arg1: memref<32x32xf32, #tpu.memory_space<vmem>>, %arg2: memref<5x1x32xf32, #tpu.memory_space<vmem>>, %arg3: memref<5x32x160xbf16, #tpu.memory_space<vmem>>, %arg4: memref<5x32x1xf32, #tpu.memory_space<vmem>>, %arg5: memref<5x32x160xbf16, #tpu.memory_space<vmem>>, %arg6: memref<5x32x1xf32, #tpu.memory_space<vmem>>, %arg7: memref<4x32xbf16, #tpu.memory_space<vmem>>, %arg8: memref<4x1xf32, #tpu.memory_space<vmem>>, %arg9: memref<4x32xf32, #tpu.memory_space<vmem>>, %arg10: memref<160x32xbf16, #tpu.memory_space<vmem>>) attributes {dimension_semantics = [#tpu.dimension_semantics<parallel>], iteration_bounds = array<i64: 1>, scalar_prefetch = 0 : i64, scratch_operands = 1 : i64, tpu.core_type = #tpu.core_type<tc>, window_params = [{transform_indices = @transform_0, window_bounds = array<i64: 32, 32>}, {pipeline_mode = #tpu.pipeline_mode<synchronous>, transform_indices = @transform_1, window_bounds = array<i64: 5, 1, 32>}, {pipeline_mode = #tpu.pipeline_mode<synchronous>, transform_indices = @transform_2, window_bounds = array<i64: 5, 32, 160>}, {pipeline_mode = #tpu.pipeline_mode<synchronous>, transform_indices = @transform_3, window_bounds = array<i64: 5, 32, 1>}, {pipeline_mode = #tpu.pipeline_mode<synchronous>, transform_indices = @transform_4, window_bounds = array<i64: 5, 32, 160>}, {pipeline_mode = #tpu.pipeline_mode<synchronous>, transform_indices = @transform_5, window_bounds = array<i64: 5, 32, 1>}, {pipeline_mode = #tpu.pipeline_mode<synchronous>, transform_indices = @transform_6, window_bounds = array<i64: 4, 32>}, {pipeline_mode = #tpu.pipeline_mode<synchronous>, transform_indices = @transform_7, window_bounds = array<i64: 4, 1>}, {transform_indices = @transform_8, window_bounds = array<i64: 4, 32>}]} {
    %cst = arith.constant 0.000000e+00 : f32
    %0 = vector.broadcast %cst : f32 to vector<32x2xf32>
    %c0 = arith.constant 0 : index
    %c0_0 = arith.constant 0 : index
    %1 = vector.load %arg1[%c0, %c0_0] : memref<32x32xf32, #tpu.memory_space<vmem>>, vector<32x32xf32>
    %c0_i32 = arith.constant 0 : i32
    %c5_i32 = arith.constant 5 : i32
    %2 = arith.addi %c0_i32, %c5_i32 : i32
    %c1_i32 = arith.constant 1 : i32
    %3 = scf.for %arg11 = %c0_i32 to %2 step %c1_i32 iter_args(%arg12 = %1) -> (vector<32x32xf32>)  : i32 {
      %cst_11 = arith.constant 0.00999999977 : f32
      %21 = vector.broadcast %cst_11 : f32 to vector<32x32xf32>
      %22 = arith.mulf %21, %arg12 : vector<32x32xf32>
      %23 = arith.maximumf %arg12, %22 : vector<32x32xf32>
      %24 = arith.index_cast %arg11 : i32 to index
      %c0_12 = arith.constant 0 : index
      %c0_13 = arith.constant 0 : index
      %25 = vector.load %arg3[%24, %c0_12, %c0_13] : memref<5x32x160xbf16, #tpu.memory_space<vmem>>, vector<1x32x160xbf16>
      %26 = vector.shape_cast %25 : vector<1x32x160xbf16> to vector<32x160xbf16>
      %27 = arith.index_cast %arg11 : i32 to index
      %c0_14 = arith.constant 0 : index
      %c0_15 = arith.constant 0 : index
      %28 = vector.load %arg4[%27, %c0_14, %c0_15] : memref<5x32x1xf32, #tpu.memory_space<vmem>>, vector<1x32x1xf32>
      %29 = vector.shape_cast %28 : vector<1x32x1xf32> to vector<32x1xf32>
      %30 = vector.extract_strided_slice %23 {offsets = [0, 0], sizes = [32, 30], strides = [1, 1]} : vector<32x32xf32> to vector<32x30xf32>
      %31 = tpu.concatenate %0, %30 in 1 : vector<32x2xf32>, vector<32x30xf32> -> vector<32x32xf32>
      %c0_16 = arith.constant 0 : index
      %c0_17 = arith.constant 0 : index
      %c0_18 = arith.constant 0 : index
      %32 = vector.load %arg2[%c0_16, %c0_17, %c0_18] : memref<5x1x32xf32, #tpu.memory_space<vmem>>, vector<1x1x32xf32>
      %33 = vector.shape_cast %32 : vector<1x1x32xf32> to vector<1x32xf32>
      %34 = vector.broadcast %33 : vector<1x32xf32> to vector<32x32xf32>
      %35 = arith.mulf %31, %34 : vector<32x32xf32>
      %36 = arith.truncf %35 : vector<32x32xf32> to vector<32x32xbf16>
      %c0_19 = arith.constant 0 : index
      %c0_20 = arith.constant 0 : index
      %37 = vector.load %arg10[%c0_19, %c0_20] : memref<160x32xbf16, #tpu.memory_space<vmem>>, vector<32x32xbf16>
      tpu.vector_store %arg10[%c0_19, %c0_20], %36 {strides = array<i32>} : memref<160x32xbf16, #tpu.memory_space<vmem>>, vector<32x32xbf16>,
      %38 = vector.extract_strided_slice %0 {offsets = [0, 0], sizes = [32, 1], strides = [1, 1]} : vector<32x2xf32> to vector<32x1xf32>
      %39 = vector.extract_strided_slice %23 {offsets = [0, 0], sizes = [32, 31], strides = [1, 1]} : vector<32x32xf32> to vector<32x31xf32>
      %40 = tpu.concatenate %38, %39 in 1 : vector<32x1xf32>, vector<32x31xf32> -> vector<32x32xf32>
      %c1 = arith.constant 1 : index
      %c0_21 = arith.constant 0 : index
      %c0_22 = arith.constant 0 : index
      %41 = vector.load %arg2[%c1, %c0_21, %c0_22] : memref<5x1x32xf32, #tpu.memory_space<vmem>>, vector<1x1x32xf32>
      %42 = vector.shape_cast %41 : vector<1x1x32xf32> to vector<1x32xf32>
      %43 = vector.broadcast %42 : vector<1x32xf32> to vector<32x32xf32>
      %44 = arith.mulf %40, %43 : vector<32x32xf32>
      %45 = arith.truncf %44 : vector<32x32xf32> to vector<32x32xbf16>
      %c32 = arith.constant 32 : index
      %c0_23 = arith.constant 0 : index
      %46 = vector.load %arg10[%c32, %c0_23] : memref<160x32xbf16, #tpu.memory_space<vmem>>, vector<32x32xbf16>
      tpu.vector_store %arg10[%c32, %c0_23], %45 {strides = array<i32>} : memref<160x32xbf16, #tpu.memory_space<vmem>>, vector<32x32xbf16>,
      %47 = arith.truncf %23 : vector<32x32xf32> to vector<32x32xbf16>
      %c64 = arith.constant 64 : index
      %c0_24 = arith.constant 0 : index
      %48 = vector.load %arg10[%c64, %c0_24] : memref<160x32xbf16, #tpu.memory_space<vmem>>, vector<32x32xbf16>
      tpu.vector_store %arg10[%c64, %c0_24], %47 {strides = array<i32>} : memref<160x32xbf16, #tpu.memory_space<vmem>>, vector<32x32xbf16>,
      %49 = vector.extract_strided_slice %23 {offsets = [0, 1], sizes = [32, 31], strides = [1, 1]} : vector<32x32xf32> to vector<32x31xf32>
      %50 = vector.extract_strided_slice %0 {offsets = [0, 0], sizes = [32, 1], strides = [1, 1]} : vector<32x2xf32> to vector<32x1xf32>
      %51 = tpu.concatenate %49, %50 in 1 : vector<32x31xf32>, vector<32x1xf32> -> vector<32x32xf32>
      %c3 = arith.constant 3 : index
      %c0_25 = arith.constant 0 : index
      %c0_26 = arith.constant 0 : index
      %52 = vector.load %arg2[%c3, %c0_25, %c0_26] : memref<5x1x32xf32, #tpu.memory_space<vmem>>, vector<1x1x32xf32>
      %53 = vector.shape_cast %52 : vector<1x1x32xf32> to vector<1x32xf32>
      %54 = vector.broadcast %53 : vector<1x32xf32> to vector<32x32xf32>
      %55 = arith.mulf %51, %54 : vector<32x32xf32>
      %56 = arith.truncf %55 : vector<32x32xf32> to vector<32x32xbf16>
      %c96 = arith.constant 96 : index
      %c0_27 = arith.constant 0 : index
      %57 = vector.load %arg10[%c96, %c0_27] : memref<160x32xbf16, #tpu.memory_space<vmem>>, vector<32x32xbf16>
      tpu.vector_store %arg10[%c96, %c0_27], %56 {strides = array<i32>} : memref<160x32xbf16, #tpu.memory_space<vmem>>, vector<32x32xbf16>,
      %58 = vector.extract_strided_slice %23 {offsets = [0, 2], sizes = [32, 30], strides = [1, 1]} : vector<32x32xf32> to vector<32x30xf32>
      %59 = tpu.concatenate %58, %0 in 1 : vector<32x30xf32>, vector<32x2xf32> -> vector<32x32xf32>
      %c4 = arith.constant 4 : index
      %c0_28 = arith.constant 0 : index
      %c0_29 = arith.constant 0 : index
      %60 = vector.load %arg2[%c4, %c0_28, %c0_29] : memref<5x1x32xf32, #tpu.memory_space<vmem>>, vector<1x1x32xf32>
      %61 = vector.shape_cast %60 : vector<1x1x32xf32> to vector<1x32xf32>
      %62 = vector.broadcast %61 : vector<1x32xf32> to vector<32x32xf32>
      %63 = arith.mulf %59, %62 : vector<32x32xf32>
      %64 = arith.truncf %63 : vector<32x32xf32> to vector<32x32xbf16>
      %c128 = arith.constant 128 : index
      %c0_30 = arith.constant 0 : index
      %65 = vector.load %arg10[%c128, %c0_30] : memref<160x32xbf16, #tpu.memory_space<vmem>>, vector<32x32xbf16>
      tpu.vector_store %arg10[%c128, %c0_30], %64 {strides = array<i32>} : memref<160x32xbf16, #tpu.memory_space<vmem>>, vector<32x32xbf16>,
      %c0_31 = arith.constant 0 : index
      %c0_32 = arith.constant 0 : index
      %66 = vector.load %arg10[%c0_31, %c0_32] : memref<160x32xbf16, #tpu.memory_space<vmem>>, vector<160x32xbf16>
      %cst_33 = arith.constant dense<0.000000e+00> : vector<32x32xf32>
      %67 = tpu.matmul %26, %66, %cst_33 {dimension_numbers = #tpu.dot_dimension_numbers<[1], [0], [0], [1], [0, 0, 1, 1], [], []>} : vector<32x160xbf16>, vector<160x32xbf16>, vector<32x32xf32> -> vector<32x32xf32>
      %68 = vector.broadcast %29 : vector<32x1xf32> to vector<32x32xf32>
      %69 = arith.addf %67, %68 : vector<32x32xf32>
      %cst_34 = arith.constant 0.00999999977 : f32
      %70 = vector.broadcast %cst_34 : f32 to vector<32x32xf32>
      %71 = arith.mulf %70, %69 : vector<32x32xf32>
      %72 = arith.maximumf %69, %71 : vector<32x32xf32>
      %73 = arith.index_cast %arg11 : i32 to index
      %c0_35 = arith.constant 0 : index
      %c0_36 = arith.constant 0 : index
      %74 = vector.load %arg5[%73, %c0_35, %c0_36] : memref<5x32x160xbf16, #tpu.memory_space<vmem>>, vector<1x32x160xbf16>
      %75 = vector.shape_cast %74 : vector<1x32x160xbf16> to vector<32x160xbf16>
      %76 = arith.index_cast %arg11 : i32 to index
      %c0_37 = arith.constant 0 : index
      %c0_38 = arith.constant 0 : index
      %77 = vector.load %arg6[%76, %c0_37, %c0_38] : memref<5x32x1xf32, #tpu.memory_space<vmem>>, vector<1x32x1xf32>
      %78 = vector.shape_cast %77 : vector<1x32x1xf32> to vector<32x1xf32>
      %79 = vector.extract_strided_slice %72 {offsets = [0, 0], sizes = [32, 30], strides = [1, 1]} : vector<32x32xf32> to vector<32x30xf32>
      %80 = tpu.concatenate %0, %79 in 1 : vector<32x2xf32>, vector<32x30xf32> -> vector<32x32xf32>
      %c0_39 = arith.constant 0 : index
      %c0_40 = arith.constant 0 : index
      %c0_41 = arith.constant 0 : index
      %81 = vector.load %arg2[%c0_39, %c0_40, %c0_41] : memref<5x1x32xf32, #tpu.memory_space<vmem>>, vector<1x1x32xf32>
      %82 = vector.shape_cast %81 : vector<1x1x32xf32> to vector<1x32xf32>
      %83 = vector.broadcast %82 : vector<1x32xf32> to vector<32x32xf32>
      %84 = arith.mulf %80, %83 : vector<32x32xf32>
      %85 = arith.truncf %84 : vector<32x32xf32> to vector<32x32xbf16>
      %c0_42 = arith.constant 0 : index
      %c0_43 = arith.constant 0 : index
      %86 = vector.load %arg10[%c0_42, %c0_43] : memref<160x32xbf16, #tpu.memory_space<vmem>>, vector<32x32xbf16>
      tpu.vector_store %arg10[%c0_42, %c0_43], %85 {strides = array<i32>} : memref<160x32xbf16, #tpu.memory_space<vmem>>, vector<32x32xbf16>,
      %87 = vector.extract_strided_slice %0 {offsets = [0, 0], sizes = [32, 1], strides = [1, 1]} : vector<32x2xf32> to vector<32x1xf32>
      %88 = vector.extract_strided_slice %72 {offsets = [0, 0], sizes = [32, 31], strides = [1, 1]} : vector<32x32xf32> to vector<32x31xf32>
      %89 = tpu.concatenate %87, %88 in 1 : vector<32x1xf32>, vector<32x31xf32> -> vector<32x32xf32>
      %c1_44 = arith.constant 1 : index
      %c0_45 = arith.constant 0 : index
      %c0_46 = arith.constant 0 : index
      %90 = vector.load %arg2[%c1_44, %c0_45, %c0_46] : memref<5x1x32xf32, #tpu.memory_space<vmem>>, vector<1x1x32xf32>
      %91 = vector.shape_cast %90 : vector<1x1x32xf32> to vector<1x32xf32>
      %92 = vector.broadcast %91 : vector<1x32xf32> to vector<32x32xf32>
      %93 = arith.mulf %89, %92 : vector<32x32xf32>
      %94 = arith.truncf %93 : vector<32x32xf32> to vector<32x32xbf16>
      %c32_47 = arith.constant 32 : index
      %c0_48 = arith.constant 0 : index
      %95 = vector.load %arg10[%c32_47, %c0_48] : memref<160x32xbf16, #tpu.memory_space<vmem>>, vector<32x32xbf16>
      tpu.vector_store %arg10[%c32_47, %c0_48], %94 {strides = array<i32>} : memref<160x32xbf16, #tpu.memory_space<vmem>>, vector<32x32xbf16>,
      %96 = arith.truncf %72 : vector<32x32xf32> to vector<32x32xbf16>
      %c64_49 = arith.constant 64 : index
      %c0_50 = arith.constant 0 : index
      %97 = vector.load %arg10[%c64_49, %c0_50] : memref<160x32xbf16, #tpu.memory_space<vmem>>, vector<32x32xbf16>
      tpu.vector_store %arg10[%c64_49, %c0_50], %96 {strides = array<i32>} : memref<160x32xbf16, #tpu.memory_space<vmem>>, vector<32x32xbf16>,
      %98 = vector.extract_strided_slice %72 {offsets = [0, 1], sizes = [32, 31], strides = [1, 1]} : vector<32x32xf32> to vector<32x31xf32>
      %99 = vector.extract_strided_slice %0 {offsets = [0, 0], sizes = [32, 1], strides = [1, 1]} : vector<32x2xf32> to vector<32x1xf32>
      %100 = tpu.concatenate %98, %99 in 1 : vector<32x31xf32>, vector<32x1xf32> -> vector<32x32xf32>
      %c3_51 = arith.constant 3 : index
      %c0_52 = arith.constant 0 : index
      %c0_53 = arith.constant 0 : index
      %101 = vector.load %arg2[%c3_51, %c0_52, %c0_53] : memref<5x1x32xf32, #tpu.memory_space<vmem>>, vector<1x1x32xf32>
      %102 = vector.shape_cast %101 : vector<1x1x32xf32> to vector<1x32xf32>
      %103 = vector.broadcast %102 : vector<1x32xf32> to vector<32x32xf32>
      %104 = arith.mulf %100, %103 : vector<32x32xf32>
      %105 = arith.truncf %104 : vector<32x32xf32> to vector<32x32xbf16>
      %c96_54 = arith.constant 96 : index
      %c0_55 = arith.constant 0 : index
      %106 = vector.load %arg10[%c96_54, %c0_55] : memref<160x32xbf16, #tpu.memory_space<vmem>>, vector<32x32xbf16>
      tpu.vector_store %arg10[%c96_54, %c0_55], %105 {strides = array<i32>} : memref<160x32xbf16, #tpu.memory_space<vmem>>, vector<32x32xbf16>,
      %107 = vector.extract_strided_slice %72 {offsets = [0, 2], sizes = [32, 30], strides = [1, 1]} : vector<32x32xf32> to vector<32x30xf32>
      %108 = tpu.concatenate %107, %0 in 1 : vector<32x30xf32>, vector<32x2xf32> -> vector<32x32xf32>
      %c4_56 = arith.constant 4 : index
      %c0_57 = arith.constant 0 : index
      %c0_58 = arith.constant 0 : index
      %109 = vector.load %arg2[%c4_56, %c0_57, %c0_58] : memref<5x1x32xf32, #tpu.memory_space<vmem>>, vector<1x1x32xf32>
      %110 = vector.shape_cast %109 : vector<1x1x32xf32> to vector<1x32xf32>
      %111 = vector.broadcast %110 : vector<1x32xf32> to vector<32x32xf32>
      %112 = arith.mulf %108, %111 : vector<32x32xf32>
      %113 = arith.truncf %112 : vector<32x32xf32> to vector<32x32xbf16>
      %c128_59 = arith.constant 128 : index
      %c0_60 = arith.constant 0 : index
      %114 = vector.load %arg10[%c128_59, %c0_60] : memref<160x32xbf16, #tpu.memory_space<vmem>>, vector<32x32xbf16>
      tpu.vector_store %arg10[%c128_59, %c0_60], %113 {strides = array<i32>} : memref<160x32xbf16, #tpu.memory_space<vmem>>, vector<32x32xbf16>,
      %c0_61 = arith.constant 0 : index
      %c0_62 = arith.constant 0 : index
      %115 = vector.load %arg10[%c0_61, %c0_62] : memref<160x32xbf16, #tpu.memory_space<vmem>>, vector<160x32xbf16>
      %cst_63 = arith.constant dense<0.000000e+00> : vector<32x32xf32>
      %116 = tpu.matmul %75, %115, %cst_63 {dimension_numbers = #tpu.dot_dimension_numbers<[1], [0], [0], [1], [0, 0, 1, 1], [], []>} : vector<32x160xbf16>, vector<160x32xbf16>, vector<32x32xf32> -> vector<32x32xf32>
      %117 = vector.broadcast %78 : vector<32x1xf32> to vector<32x32xf32>
      %118 = arith.addf %116, %117 : vector<32x32xf32>
      %cst_64 = arith.constant 3.000000e-01 : f32
      %119 = vector.broadcast %cst_64 : f32 to vector<32x32xf32>
      %120 = arith.mulf %119, %118 : vector<32x32xf32>
      %121 = arith.addf %arg12, %120 : vector<32x32xf32>
      scf.yield %121 : vector<32x32xf32>
    }
    %c5_i32_1 = arith.constant 5 : i32
    %c0_2 = arith.constant 0 : index
    %c0_3 = arith.constant 0 : index
    %4 = vector.load %arg7[%c0_2, %c0_3] : memref<4x32xbf16, #tpu.memory_space<vmem>>, vector<4x32xbf16>
    %5 = arith.truncf %3 : vector<32x32xf32> to vector<32x32xbf16>
    %cst_4 = arith.constant dense<0.000000e+00> : vector<4x32xf32>
    %6 = tpu.matmul %4, %5, %cst_4 {dimension_numbers = #tpu.dot_dimension_numbers<[1], [0], [0], [1], [0, 0, 1, 1], [], []>} : vector<4x32xbf16>, vector<32x32xbf16>, vector<4x32xf32> -> vector<4x32xf32>
    %c0_5 = arith.constant 0 : index
    %c0_6 = arith.constant 0 : index
    %7 = vector.load %arg8[%c0_5, %c0_6] : memref<4x1xf32, #tpu.memory_space<vmem>>, vector<4x1xf32>
    %8 = vector.broadcast %7 : vector<4x1xf32> to vector<4x32xf32>
    %9 = arith.addf %6, %8 : vector<4x32xf32>
    %cst_7 = arith.constant dense<0xFF800000> : vector<32xf32>
    %10 = vector.multi_reduction <maximumf>, %9, %cst_7 [0] : vector<4x32xf32> to vector<32xf32>
    %11 = vector.shape_cast %10 : vector<32xf32> to vector<1x32xf32>
    %12 = vector.broadcast %11 : vector<1x32xf32> to vector<4x32xf32>
    %13 = arith.subf %9, %12 : vector<4x32xf32>
    %14 = math.exp %13 : vector<4x32xf32>
    %cst_8 = arith.constant dense<0.000000e+00> : vector<32xf32>
    %15 = vector.multi_reduction <add>, %14, %cst_8 [0] : vector<4x32xf32> to vector<32xf32>
    %16 = vector.shape_cast %15 : vector<32xf32> to vector<1x32xf32>
    %17 = tpu.reciprocal %16 {approx = true} : vector<1x32xf32> -> vector<1x32xf32>
    %18 = vector.broadcast %17 : vector<1x32xf32> to vector<4x32xf32>
    %19 = arith.mulf %14, %18 : vector<4x32xf32>
    %c0_9 = arith.constant 0 : index
    %c0_10 = arith.constant 0 : index
    %20 = vector.load %arg9[%c0_9, %c0_10] : memref<4x32xf32, #tpu.memory_space<vmem>>, vector<4x32xf32>
    tpu.vector_store %arg9[%c0_9, %c0_10], %19 {strides = array<i32>} : memref<4x32xf32, #tpu.memory_space<vmem>>, vector<4x32xf32>,
    return
  }
  func.func @transform_0(%arg0: i32) -> (i32, i32) {
    %c0_i32 = arith.constant 0 : i32
    %c0_i32_0 = arith.constant 0 : i32
    return %c0_i32, %arg0 : i32, i32
  }
  func.func @transform_1(%arg0: i32) -> (i32, i32, i32) {
    %c0_i32 = arith.constant 0 : i32
    %c0_i32_0 = arith.constant 0 : i32
    %c0_i32_1 = arith.constant 0 : i32
    %c0_i32_2 = arith.constant 0 : i32
    return %c0_i32, %c0_i32_0, %c0_i32_1 : i32, i32, i32
  }
  func.func @transform_2(%arg0: i32) -> (i32, i32, i32) {
    %c0_i32 = arith.constant 0 : i32
    %c0_i32_0 = arith.constant 0 : i32
    %c0_i32_1 = arith.constant 0 : i32
    %c0_i32_2 = arith.constant 0 : i32
    return %c0_i32, %c0_i32_0, %c0_i32_1 : i32, i32, i32
  }
  func.func @transform_3(%arg0: i32) -> (i32, i32, i32) {
    %c0_i32 = arith.constant 0 : i32
    %c0_i32_0 = arith.constant 0 : i32
    %c0_i32_1 = arith.constant 0 : i32
    %c0_i32_2 = arith.constant 0 : i32
    return %c0_i32, %c0_i32_0, %c0_i32_1 : i32, i32, i32
  }
  func.func @transform_4(%arg0: i32) -> (i32, i32, i32) {
    %c0_i32 = arith.constant 0 : i32
    %c0_i32_0 = arith.constant 0 : i32
    %c0_i32_1 = arith.constant 0 : i32
    %c0_i32_2 = arith.constant 0 : i32
    return %c0_i32, %c0_i32_0, %c0_i32_1 : i32, i32, i32
  }
  func.func @transform_5(%arg0: i32) -> (i32, i32, i32) {
    %c0_i32 = arith.constant 0 : i32
    %c0_i32_0 = arith.constant 0 : i32
    %c0_i32_1 = arith.constant 0 : i32
    %c0_i32_2 = arith.constant 0 : i32
    return %c0_i32, %c0_i32_0, %c0_i32_1 : i32, i32, i32
  }
  func.func @transform_6(%arg0: i32) -> (i32, i32) {
    %c0_i32 = arith.constant 0 : i32
    %c0_i32_0 = arith.constant 0 : i32
    %c0_i32_1 = arith.constant 0 : i32
    return %c0_i32, %c0_i32_0 : i32, i32
  }
  func.func @transform_7(%arg0: i32) -> (i32, i32) {
    %c0_i32 = arith.constant 0 : i32
    %c0_i32_0 = arith.constant 0 : i32
    %c0_i32_1 = arith.constant 0 : i32
    return %c0_i32, %c0_i32_0 : i32, i32
  }
  func.func @transform_8(%arg0: i32) -> (i32, i32) {
    %c0_i32 = arith.constant 0 : i32
    %c0_i32_0 = arith.constant 0 : i32
    return %c0_i32, %arg0 : i32, i32
  }
}

</mosaic_0001>

<llo_original>
// kernel: generator_forward.2
$region0: #{generator_forward.2}
  #allocation0 [shape = 'u32[]', space=smem, size = 0x4, offset = 0x4, fixed_abs, tag = 'smem constant byte address 0x4 - core index']
  #allocation1 [shape = 'u32[144,128]{1,0:T(1,128)}', space=vmem, size = 0x12000, scoped, tag = 'internal scratch']
  %s0 = inlined_call_operand.vmem [shape: f32[2,32], index: 0, kind: input, shape index: {}]
  %s1 = inlined_call_operand.vmem [shape: f32[1,32], index: 1, kind: input, shape index: {}]
  %s2 = inlined_call_operand.vmem [shape: f32[1,32], index: 2, kind: input, shape index: {}]
  %s3 = inlined_call_operand.hbm [shape: bf16[32,512], index: 3, kind: input, shape index: {}]
  %s4 = inlined_call_operand.vmem [shape: f32[1,512], index: 4, kind: input, shape index: {}]
  %s5 = inlined_call_operand.vmem [shape: f32[2,512], index: 5, kind: output, shape index: {}]
  %s6 = sld [smem:[#allocation0]]
  $region34: #{generator_forward.2} parent=0
    _
  %s8 = ssub.s32 1, %s6
  %s9 = scalar_select 0, %s8, %s6
  $region1: #{generator_forward.2} parent=0
    #allocation2 [shape = 'u8[32768]{0}', space=vmem, size = 0x8000, scoped, tag = 'input window, operand 3, single buffered']
    #allocation3 [shape = 's32[1]{0}', space=sflag, size = 0x4, scoped, tag = 'scoped memory for generator_forward.2']
    %10 = vsyncpa [#allocation3], 0
    // Predicated region
    $region2: #{generator_forward.2} parent=1 // pred_check
      _
    $region3: #{generator_forward.2} parent=1 // pred_check_branch
      %12 = sbr.rel (0) target = $region5
    $region4: #{generator_forward.2} parent=1 // pred_region
      _
    $region5: #{generator_forward.2} parent=1 // pred_fallthru
      _
    // Predicated region
    $region6: #{generator_forward.2} parent=1 // pred_check
      _
    $region7: #{generator_forward.2} parent=1 // pred_check_branch
      %14 = sbr.rel (0) target = $region9
    $region8: #{generator_forward.2} parent=1 // pred_region
      _
    $region9: #{generator_forward.2} parent=1 // pred_fallthru
      _
    // Predicated region
    $region10: #{generator_forward.2} parent=1 // pred_check
      _
    $region11: #{generator_forward.2} parent=1 // pred_check_branch
      %16 = sbr.rel (0) target = $region13
    $region12: #{generator_forward.2} parent=1 // pred_region
      _
    $region13: #{generator_forward.2} parent=1 // pred_fallthru
      _
    // Predicated region
    $region14: #{generator_forward.2} parent=1 // pred_check
      _
    $region15: #{generator_forward.2} parent=1 // pred_check_branch
      %18 = sbr.rel (0) target = $region17
    $region16: #{generator_forward.2} parent=1 // pred_region
      %s20 = ssub.s32 1024, 1024
      %21 = vsyncadd [#allocation3], %s20
      %s22 = sshll.u32 [#allocation2], 4
      %s23 = int_to_ptr.vmem [resolvable:$true] %s22
      %28 = dma.hbm_to_vmem [thread:$0]  %s3, 1024, %s23, [#allocation3], 256, 256, 16
    $region17: #{generator_forward.2} parent=1 // pred_fallthru
      _
    // Predicated region
    $region18: #{generator_forward.2} parent=1 // pred_check
      _
    $region19: #{generator_forward.2} parent=1 // pred_check_branch
      %30 = sbr.rel (0) target = $region21
    $region20: #{generator_forward.2} parent=1 // pred_region
      _
    $region21: #{generator_forward.2} parent=1 // pred_fallthru
      _
    // Predicated region
    $region22: #{generator_forward.2} parent=1 // pred_check
      _
    $region23: #{generator_forward.2} parent=1 // pred_check_branch
      %32 = sbr.rel (0) target = $region25
    $region24: #{generator_forward.2} parent=1 // pred_region
      %33 = dma.done [#allocation3], 1024
    $region25: #{generator_forward.2} parent=1 // pred_fallthru
      _
    %v35 = vld [vmem:[%s0] sm:$0x3]
    %vm36 = vcmask 254976
    %v37 = vsel %vm36, %v35, 0.0
    %38 = vadd.xlane.f32.xlu0 %v37
    %v39 = vpop.xlane.xlu0 %38
    %v40 = vrcp.pop 32.0
    %v41 = vmul.f32 %v39, %v40
    %v42 = vsub.f32 %v35, %v41
    %v43 = vmul.f32 %v42, %v42
    %v44 = vsel %vm36, %v43, 0.0
    %45 = vadd.xlane.f32.xlu0 %v44
    %v46 = vpop.xlane.xlu0 %45
    %v47 = vmul.f32 %v46, %v40
    %v48 = vadd.f32 %v47, 1e-05
    %v49 = vrsqrt.pop %v48
    %v50 = vmul.f32 %v42, %v49
    %v51 = vld [vmem:[%s1] sm:$0x1]
    %v53 = vlaneseq
    %v54 = vshrl.u32 %v53, 7
    %v55 = vsub.s32 0, %v54
    %v56 = vrot.slane %v51, %v55
    %v58 = vmul.f32 %v50, %v56
    %v59 = vld [vmem:[%s2] sm:$0x1]
    %v61 = vlaneseq
    %v62 = vshrl.u32 %v61, 7
    %v63 = vsub.s32 0, %v62
    %v64 = vrot.slane %v59, %v63
    %v66 = vadd.f32 %v58, %v64
    %v67 = vpack.c.bf16 %v66, %v66
    %v68 = vld [vmem:[#allocation2] sm:$0xff]
    %v69 = vld [vmem:[#allocation2 + $0x8] sm:$0xff]
    %v70 = vld [vmem:[#allocation2 + $0x10] sm:$0xff]
    %v71 = vld [vmem:[#allocation2 + $0x18] sm:$0xff]
    %v72 = vld [vmem:[#allocation2 + $0x20] sm:$0xff]
    %v73 = vld [vmem:[#allocation2 + $0x28] sm:$0xff]
    %v74 = vld [vmem:[#allocation2 + $0x30] sm:$0xff]
    %v75 = vld [vmem:[#allocation2 + $0x38] sm:$0xff]
    %v76 = vld [vmem:[%s4] sm:$0xf]
    %v78 = vlaneseq
    %v79 = vshrl.u32 %v78, 7
    %v80 = vsub.s32 0, %v79
    %v81 = vrot.slane %v76, %v80
    %v82 = vlaneseq
    %v83 = vshrl.u32 %v82, 7
    %v84 = vsub.s32 1, %v83
    %v85 = vrot.slane %v76, %v84
    %v86 = vlaneseq
    %v87 = vshrl.u32 %v86, 7
    %v88 = vsub.s32 2, %v87
    %v89 = vrot.slane %v76, %v88
    %v90 = vlaneseq
    %v91 = vshrl.u32 %v90, 7
    %v92 = vsub.s32 3, %v91
    %v93 = vrot.slane %v76, %v92
    %v106 = vunpack.c.l.b16 %v68
    %v107 = vunpack.c.h.b16 %v68
    %v108 = vunpack.c.l.b16 %v69
    %v109 = vunpack.c.h.b16 %v69
    %v110 = vunpack.c.l.b16 %v70
    %v111 = vunpack.c.h.b16 %v70
    %v112 = vunpack.c.l.b16 %v71
    %v113 = vunpack.c.h.b16 %v71
    %v114 = vunpack.c.l.b16 %v72
    %v115 = vunpack.c.h.b16 %v72
    %v116 = vunpack.c.l.b16 %v73
    %v117 = vunpack.c.h.b16 %v73
    %v118 = vunpack.c.l.b16 %v74
    %v119 = vunpack.c.h.b16 %v74
    %v120 = vunpack.c.l.b16 %v75
    %v121 = vunpack.c.h.b16 %v75
    %v122 = vpack.c.b16 %v110, %v106
    %v123 = vpack.c.b16 %v111, %v107
    %v124 = vpack.c.b16 %v112, %v108
    %v125 = vpack.c.b16 %v113, %v109
    %v126 = vpack.c.b16 %v118, %v114
    %v127 = vpack.c.b16 %v119, %v115
    %v128 = vpack.c.b16 %v120, %v116
    %v129 = vpack.c.b16 %v121, %v117
    %vm138 = vcmask 261120
    %v140 = vsel %vm138, %v67, 0
    %142 = vmatprep.subr.bf16.mxu0 %v123
    %143 = vmatpush1.bf16.msra.mxu0 %v122
    %144 = vmatprep.subr.bf16.mxu0 %v127
    %145 = vmatpush1.bf16.msra.mxu0 %v126
    %146 = vmatprep.subr.bf16.mxu0 0
    %147 = vmatpush1.bf16.msra.mxu0 0
    %148 = vmatprep.subr.bf16.mxu0 0
    %149 = vmatpush1.bf16.msra.mxu0 0
    %150 = vmatprep.subr.bf16.mxu0 0
    %151 = vmatpush1.bf16.msra.mxu0 0
    %152 = vmatprep.subr.bf16.mxu0 0
    %153 = vmatpush1.bf16.msra.mxu0 0
    %154 = vmatprep.subr.bf16.mxu0 0
    %155 = vmatpush1.bf16.msra.mxu0 0
    %156 = vmatprep.subr.bf16.mxu0 0
    %157 = vmatpush1.bf16.msra.mxu0 0
    %158 = vmatprep.subr.bf16.mxu0 0
    %159 = vmatpush1.bf16.msra.mxu0 0
    %160 = vmatprep.subr.bf16.mxu0 0
    %161 = vmatpush1.bf16.msra.mxu0 0
    %162 = vmatprep.subr.bf16.mxu0 0
    %163 = vmatpush1.bf16.msra.mxu0 0
    %164 = vmatprep.subr.bf16.mxu0 0
    %165 = vmatpush1.bf16.msra.mxu0 0
    %166 = vmatprep.subr.bf16.mxu0 0
    %167 = vmatpush1.bf16.msra.mxu0 0
    %168 = vmatprep.subr.bf16.mxu0 0
    %169 = vmatpush1.bf16.msra.mxu0 0
    %170 = vmatprep.subr.bf16.mxu0 0
    %171 = vmatpush1.bf16.msra.mxu0 0
    %172 = vmatprep.subr.bf16.mxu0 0
    %173 = vmatpush1.bf16.msra.mxu0 0
    %174 = vmatprep.mubr.bf16.mxu0 0
    %175 = vmatmul.mubr.bf16.gmra.mrb[0].mxu0 %v140
    %v176 = vpop.f32.mrb[0].mxu0
    %v177 = vadd.f32 %v81, %v176
    %v178 = vpop.f32.mrb[0].mxu0
    %v179 = vadd.f32 %v85, %v178
    %v180 = vpop.f32.mrb[0].mxu0
    %v181 = vpop.f32.mrb[0].mxu0
    %182 = vdwg.mxu0
    %183 = vmatprep.subr.bf16.mxu0 %v125
    %184 = vmatpush1.bf16.msra.mxu0 %v124
    %185 = vmatprep.subr.bf16.mxu0 %v129
    %186 = vmatpush1.bf16.msra.mxu0 %v128
    %187 = vmatprep.subr.bf16.mxu0 0
    %188 = vmatpush1.bf16.msra.mxu0 0
    %189 = vmatprep.subr.bf16.mxu0 0
    %190 = vmatpush1.bf16.msra.mxu0 0
    %191 = vmatprep.subr.bf16.mxu0 0
    %192 = vmatpush1.bf16.msra.mxu0 0
    %193 = vmatprep.subr.bf16.mxu0 0
    %194 = vmatpush1.bf16.msra.mxu0 0
    %195 = vmatprep.subr.bf16.mxu0 0
    %196 = vmatpush1.bf16.msra.mxu0 0
    %197 = vmatprep.subr.bf16.mxu0 0
    %198 = vmatpush1.bf16.msra.mxu0 0
    %199 = vmatprep.subr.bf16.mxu0 0
    %200 = vmatpush1.bf16.msra.mxu0 0
    %201 = vmatprep.subr.bf16.mxu0 0
    %202 = vmatpush1.bf16.msra.mxu0 0
    %203 = vmatprep.subr.bf16.mxu0 0
    %204 = vmatpush1.bf16.msra.mxu0 0
    %205 = vmatprep.subr.bf16.mxu0 0
    %206 = vmatpush1.bf16.msra.mxu0 0
    %207 = vmatprep.subr.bf16.mxu0 0
    %208 = vmatpush1.bf16.msra.mxu0 0
    %209 = vmatprep.subr.bf16.mxu0 0
    %210 = vmatpush1.bf16.msra.mxu0 0
    %211 = vmatprep.subr.bf16.mxu0 0
    %212 = vmatpush1.bf16.msra.mxu0 0
    %213 = vmatprep.subr.bf16.mxu0 0
    %214 = vmatpush1.bf16.msra.mxu0 0
    %215 = vmatprep.mubr.bf16.mxu0 0
    %216 = vmatmul.mubr.bf16.gmra.mrb[0].mxu0 %v140
    %v217 = vpop.f32.mrb[0].mxu0
    %v218 = vadd.f32 %v89, %v217
    %v219 = vpop.f32.mrb[0].mxu0
    %v220 = vadd.f32 %v93, %v219
    %v221 = vpop.f32.mrb[0].mxu0
    %v222 = vpop.f32.mrb[0].mxu0
    %223 = vdwg.mxu0
    %v228 = vcombine.low %v177, %v179
    %v229 = vcombine.low %v218, %v220
    %v231 = vunpack.c.l.s4 1983009808
    %v232 = vunpack.c.0.s8 %v231
    %v233 = vlaneseq
    %v234 = vshrl.u32 %v233, 7
    %v235 = vsub.s32 %v232, %v234
    %v236 = vrot.slane %v228, %v235
    %v238 = vunpack.c.l.s4 1983009808
    %v239 = vunpack.c.0.s8 %v238
    %v240 = vlaneseq
    %v241 = vshrl.u32 %v240, 7
    %v242 = vsub.s32 %v239, %v241
    %v243 = vrot.slane %v229, %v242
    %v244 = vcombine.low %v236, %v243
    %246 = vst [vmem:[%s5] sm:$0xff] %v244
    // Predicated region
    $region26: #{generator_forward.2} parent=1 // pred_check
      _
    $region27: #{generator_forward.2} parent=1 // pred_check_branch
      %248 = sbr.rel (0) target = $region29
    $region28: #{generator_forward.2} parent=1 // pred_region
      _
    $region29: #{generator_forward.2} parent=1 // pred_fallthru
      _
    // Predicated region
    $region30: #{generator_forward.2} parent=1 // pred_check
      _
    $region31: #{generator_forward.2} parent=1 // pred_check_branch
      %250 = sbr.rel (0) target = $region33
    $region32: #{generator_forward.2} parent=1 // pred_region
      _
    $region33: #{generator_forward.2} parent=1 // pred_fallthru
      _
    %251 = vsyncpa [#allocation3], 1

// kernel: generator_forward.3
$region0: #{generator_forward.3}
  #allocation0 [shape = 'u32[]', space=smem, size = 0x4, offset = 0x4, fixed_abs, tag = 'smem constant byte address 0x4 - core index']
  #allocation1 [shape = 'u32[144,128]{1,0:T(1,128)}', space=vmem, size = 0x12000, scoped, tag = 'internal scratch']
  #allocation2 [shape = 'bf16[160,32]{1,0:T(16,128)(2,1)}', space=vmem, size = 0xa000, scoped, tag = 'scratch operand']
  %s0 = inlined_call_operand.vmem [shape: f32[32,32], index: 0, kind: input, shape index: {}]
  %s1 = inlined_call_operand.vmem [shape: f32[5,1,32], index: 1, kind: input, shape index: {}]
  %s2 = inlined_call_operand.vmem [shape: bf16[5,32,160], index: 2, kind: input, shape index: {}]
  %s3 = inlined_call_operand.vmem [shape: f32[5,32,1], index: 3, kind: input, shape index: {}]
  %s4 = inlined_call_operand.vmem [shape: bf16[5,32,160], index: 4, kind: input, shape index: {}]
  %s5 = inlined_call_operand.vmem [shape: f32[5,32,1], index: 5, kind: input, shape index: {}]
  %s6 = inlined_call_operand.vmem [shape: bf16[4,32], index: 6, kind: input, shape index: {}]
  %s7 = inlined_call_operand.vmem [shape: f32[4,1], index: 7, kind: input, shape index: {}]
  %s8 = inlined_call_operand.vmem [shape: f32[4,32], index: 8, kind: output, shape index: {}]
  %s9 = sld [smem:[#allocation0]]
  $region49: #{generator_forward.3} parent=0
    _
  %s11 = ssub.s32 1, %s9
  %s12 = scalar_select 0, %s11, %s9
  // Predicated region
  $region2: #{generator_forward.3} parent=0 // pred_check
    _
  $region3: #{generator_forward.3} parent=0 // pred_check_branch
    %14 = sbr.rel (0) target = $region5
  $region4: #{generator_forward.3} parent=0 // pred_region
    _
  $region5: #{generator_forward.3} parent=0 // pred_fallthru
    _
  // Predicated region
  $region6: #{generator_forward.3} parent=0 // pred_check
    _
  $region7: #{generator_forward.3} parent=0 // pred_check_branch
    %16 = sbr.rel (0) target = $region9
  $region8: #{generator_forward.3} parent=0 // pred_region
    _
  $region9: #{generator_forward.3} parent=0 // pred_fallthru
    _
  // Predicated region
  $region10: #{generator_forward.3} parent=0 // pred_check
    _
  $region11: #{generator_forward.3} parent=0 // pred_check_branch
    %18 = sbr.rel (0) target = $region13
  $region12: #{generator_forward.3} parent=0 // pred_region
    _
  $region13: #{generator_forward.3} parent=0 // pred_fallthru
    _
  // Predicated region
  $region14: #{generator_forward.3} parent=0 // pred_check
    _
  $region15: #{generator_forward.3} parent=0 // pred_check_branch
    %20 = sbr.rel (0) target = $region17
  $region16: #{generator_forward.3} parent=0 // pred_region
    _
  $region17: #{generator_forward.3} parent=0 // pred_fallthru
    _
  // Predicated region
  $region18: #{generator_forward.3} parent=0 // pred_check
    _
  $region19: #{generator_forward.3} parent=0 // pred_check_branch
    %22 = sbr.rel (0) target = $region21
  $region20: #{generator_forward.3} parent=0 // pred_region
    _
  $region21: #{generator_forward.3} parent=0 // pred_fallthru
    _
  // Predicated region
  $region22: #{generator_forward.3} parent=0 // pred_check
    _
  $region23: #{generator_forward.3} parent=0 // pred_check_branch
    %24 = sbr.rel (0) target = $region25
  $region24: #{generator_forward.3} parent=0 // pred_region
    _
  $region25: #{generator_forward.3} parent=0 // pred_fallthru
    _
  // Predicated region
  $region26: #{generator_forward.3} parent=0 // pred_check
    _
  $region27: #{generator_forward.3} parent=0 // pred_check_branch
    %26 = sbr.rel (0) target = $region29
  $region28: #{generator_forward.3} parent=0 // pred_region
    _
  $region29: #{generator_forward.3} parent=0 // pred_fallthru
    _
  // Predicated region
  $region30: #{generator_forward.3} parent=0 // pred_check
    _
  $region31: #{generator_forward.3} parent=0 // pred_check_branch
    %28 = sbr.rel (0) target = $region33
  $region32: #{generator_forward.3} parent=0 // pred_region
    _
  $region33: #{generator_forward.3} parent=0 // pred_fallthru
    _
  %v30 = vld [vmem:[%s0] sm:$0xff]
  %v31 = vld [vmem:[%s0 + $0x8] sm:$0xff]
  %v32 = vld [vmem:[%s0 + $0x10] sm:$0xff]
  %v33 = vld [vmem:[%s0 + $0x18] sm:$0xff]
  loop: start=0, step=1, limit=5
  $region34: #{generator_forward.3} parent=0 // loop_pre_header
    _
  $region35: #{generator_forward.3} parent=0 // loop_header
    %s35 = sphi 0, %s39
    %p36 = scmp.ge.s32.totalorder %s35, 5
    %v40 = vphi %v30, %v566
    %v41 = vphi %v31, %v567
    %v42 = vphi %v32, %v568
    %v43 = vphi %v33, %v569
  $region36: #{generator_forward.3} parent=0 // loop_header_branch
    %38 = sbr.rel (%p36) target = $region40
  $region37: #{generator_forward.3} parent=0 // loop_body
    %v44 = vmul.f32 %v40, 0.01
    %v45 = vmul.f32 %v41, 0.01
    %v46 = vmul.f32 %v42, 0.01
    %v47 = vmul.f32 %v43, 0.01
    %v48 = vmax.f32 %v40, %v44
    %v49 = vmax.f32 %v41, %v45
    %v50 = vmax.f32 %v42, %v46
    %v51 = vmax.f32 %v43, %v47
    %s52 = smul.u32 %s35, 8
    %s53 = smul.addr %s52, 4
    %s54 = scalar_lea.vmem %s2, %s53
    %v55 = vld [vmem:[%s54] sm:$0xff]
    %v56 = vld [vmem:[%s54 + $0x8] sm:$0xff]
    %v57 = vld [vmem:[%s54 + $0x10] sm:$0xff]
    %v58 = vld [vmem:[%s54 + $0x18] sm:$0xff]
    %s59 = smul.u32 %s35, 32
    %s60 = scalar_lea.vmem %s3, %s59
    %v61 = vld [vmem:[%s60] sm:$0xff]
    %v62 = vld [vmem:[%s60 + $0x8] sm:$0xff]
    %v63 = vld [vmem:[%s60 + $0x10] sm:$0xff]
    %v64 = vld [vmem:[%s60 + $0x18] sm:$0xff]
    %69 = vrot.lane.b32.xlu0 %v48, 2
    %v70 = vpop.permute.xlu0 %69
    %71 = vrot.lane.b32.xlu0 %v49, 2
    %v72 = vpop.permute.xlu0 %71
    %73 = vrot.lane.b32.xlu0 %v50, 2
    %v74 = vpop.permute.xlu0 %73
    %75 = vrot.lane.b32.xlu0 %v51, 2
    %v76 = vpop.permute.xlu0 %75
    %vm81 = vcmask 15360
    %v82 = vsel %vm81, 0.0, %v70
    %v83 = vsel %vm81, 0.0, %v72
    %v84 = vsel %vm81, 0.0, %v74
    %v85 = vsel %vm81, 0.0, %v76
    %v86 = vld [vmem:[%s1] sm:$0x1]
    %v88 = vlaneseq
    %v89 = vshrl.u32 %v88, 7
    %v90 = vsub.s32 0, %v89
    %v91 = vrot.slane %v86, %v90
    %v93 = vmul.f32 %v82, %v91
    %v94 = vmul.f32 %v83, %v91
    %v95 = vmul.f32 %v84, %v91
    %v96 = vmul.f32 %v85, %v91
    %v97 = vpack.c.bf16 %v94, %v93
    %v98 = vpack.c.bf16 %v96, %v95
    %vm99 = vcmask 261120
    %100 = vst.msk [vmem:[#allocation2] sm:$0xff] %vm99, %v97
    %101 = vst.msk [vmem:[#allocation2 + $0x8] sm:$0xff] %vm99, %v98
    %102 = vrot.lane.b32.xlu0 %v48, 1
    %v103 = vpop.permute.xlu0 %102
    %104 = vrot.lane.b32.xlu0 %v49, 1
    %v105 = vpop.permute.xlu0 %104
    %106 = vrot.lane.b32.xlu0 %v50, 1
    %v107 = vpop.permute.xlu0 %106
    %108 = vrot.lane.b32.xlu0 %v51, 1
    %v109 = vpop.permute.xlu0 %108
    %vm114 = vcmask 7168
    %v115 = vsel %vm114, 0.0, %v103
    %v116 = vsel %vm114, 0.0, %v105
    %v117 = vsel %vm114, 0.0, %v107
    %v118 = vsel %vm114, 0.0, %v109
    %s119 = scalar_lea.vmem %s1, 1
    %v120 = vld [vmem:[%s119] sm:$0x1]
    %v122 = vlaneseq
    %v123 = vshrl.u32 %v122, 7
    %v124 = vsub.s32 0, %v123
    %v125 = vrot.slane %v120, %v124
    %v127 = vmul.f32 %v115, %v125
    %v128 = vmul.f32 %v116, %v125
    %v129 = vmul.f32 %v117, %v125
    %v130 = vmul.f32 %v118, %v125
    %v131 = vpack.c.bf16 %v128, %v127
    %v132 = vpack.c.bf16 %v130, %v129
    %133 = vst.msk [vmem:[#allocation2 + $0x10] sm:$0xff] %vm99, %v131
    %134 = vst.msk [vmem:[#allocation2 + $0x18] sm:$0xff] %vm99, %v132
    %v135 = vpack.c.bf16 %v49, %v48
    %v136 = vpack.c.bf16 %v51, %v50
    %137 = vst.msk [vmem:[#allocation2 + $0x20] sm:$0xff] %vm99, %v135
    %138 = vst.msk [vmem:[#allocation2 + $0x28] sm:$0xff] %vm99, %v136
    %139 = vrot.lane.b32.xlu0 %v48, 127
    %v140 = vpop.permute.xlu0 %139
    %141 = vrot.lane.b32.xlu0 %v49, 127
    %v142 = vpop.permute.xlu0 %141
    %143 = vrot.lane.b32.xlu0 %v50, 127
    %v144 = vpop.permute.xlu0 %143
    %145 = vrot.lane.b32.xlu0 %v51, 127
    %v146 = vpop.permute.xlu0 %145
    %vm151 = vcmask 252928
    %v152 = vsel %vm151, %v140, 0.0
    %v153 = vsel %vm151, %v142, 0.0
    %v154 = vsel %vm151, %v144, 0.0
    %v155 = vsel %vm151, %v146, 0.0
    %s156 = scalar_lea.vmem %s1, 3
    %v157 = vld [vmem:[%s156] sm:$0x1]
    %v159 = vlaneseq
    %v160 = vshrl.u32 %v159, 7
    %v161 = vsub.s32 0, %v160
    %v162 = vrot.slane %v157, %v161
    %v164 = vmul.f32 %v152, %v162
    %v165 = vmul.f32 %v153, %v162
    %v166 = vmul.f32 %v154, %v162
    %v167 = vmul.f32 %v155, %v162
    %v168 = vpack.c.bf16 %v165, %v164
    %v169 = vpack.c.bf16 %v167, %v166
    %170 = vst.msk [vmem:[#allocation2 + $0x30] sm:$0xff] %vm99, %v168
    %171 = vst.msk [vmem:[#allocation2 + $0x38] sm:$0xff] %vm99, %v169
    %172 = vrot.lane.b32.xlu0 %v48, 126
    %v173 = vpop.permute.xlu0 %172
    %174 = vrot.lane.b32.xlu0 %v49, 126
    %v175 = vpop.permute.xlu0 %174
    %176 = vrot.lane.b32.xlu0 %v50, 126
    %v177 = vpop.permute.xlu0 %176
    %178 = vrot.lane.b32.xlu0 %v51, 126
    %v179 = vpop.permute.xlu0 %178
    %vm184 = vcmask 244736
    %v185 = vsel %vm184, %v173, 0.0
    %v186 = vsel %vm184, %v175, 0.0
    %v187 = vsel %vm184, %v177, 0.0
    %v188 = vsel %vm184, %v179, 0.0
    %s189 = scalar_lea.vmem %s1, 4
    %v190 = vld [vmem:[%s189] sm:$0x1]
    %v192 = vlaneseq
    %v193 = vshrl.u32 %v192, 7
    %v194 = vsub.s32 0, %v193
    %v195 = vrot.slane %v190, %v194
    %v197 = vmul.f32 %v185, %v195
    %v198 = vmul.f32 %v186, %v195
    %v199 = vmul.f32 %v187, %v195
    %v200 = vmul.f32 %v188, %v195
    %v201 = vpack.c.bf16 %v198, %v197
    %v202 = vpack.c.bf16 %v200, %v199
    %203 = vst.msk [vmem:[#allocation2 + $0x40] sm:$0xff] %vm99, %v201
    %204 = vst.msk [vmem:[#allocation2 + $0x48] sm:$0xff] %vm99, %v202
    %v205 = vld [vmem:[#allocation2] sm:$0xff]
    %v206 = vld [vmem:[#allocation2 + $0x8] sm:$0xff]
    %v207 = vld [vmem:[#allocation2 + $0x10] sm:$0xff]
    %v208 = vld [vmem:[#allocation2 + $0x18] sm:$0xff]
    %v209 = vld [vmem:[#allocation2 + $0x20] sm:$0xff]
    %v210 = vld [vmem:[#allocation2 + $0x28] sm:$0xff]
    %v211 = vld [vmem:[#allocation2 + $0x30] sm:$0xff]
    %v212 = vld [vmem:[#allocation2 + $0x38] sm:$0xff]
    %v213 = vld [vmem:[#allocation2 + $0x40] sm:$0xff]
    %v214 = vld [vmem:[#allocation2 + $0x48] sm:$0xff]
    %216 = vset.pattern.permute.xlu0 0
    %217 = vperm.xlu0 %216, %v61
    %v218 = vpop.permute.xlu0 %217
    %221 = vset.pattern.permute.xlu0 0
    %222 = vperm.xlu0 %221, %v62
    %v223 = vpop.permute.xlu0 %222
    %226 = vset.pattern.permute.xlu0 0
    %227 = vperm.xlu0 %226, %v63
    %v228 = vpop.permute.xlu0 %227
    %231 = vset.pattern.permute.xlu0 0
    %232 = vperm.xlu0 %231, %v64
    %v233 = vpop.permute.xlu0 %232
    %v239 = vunpack.c.l.b16 %v55
    %v240 = vunpack.c.h.b16 %v55
    %v241 = vunpack.c.l.b16 %v56
    %v242 = vunpack.c.h.b16 %v56
    %v243 = vunpack.c.l.b16 %v57
    %v244 = vunpack.c.h.b16 %v57
    %v245 = vunpack.c.l.b16 %v58
    %v246 = vunpack.c.h.b16 %v58
    %v247 = vpack.c.b16 %v241, %v239
    %v248 = vpack.c.b16 %v242, %v240
    %v249 = vpack.c.b16 %v245, %v243
    %v250 = vpack.c.b16 %v246, %v244
    %v254 = vsel %vm99, %v248, 0
    %v257 = vsel %vm99, %v250, 0
    %259 = vmatprep.subr.bf16.mxu0 0
    %260 = vmatpush1.bf16.msra.mxu0 %v205
    %261 = vmatprep.subr.bf16.mxu0 0
    %262 = vmatpush1.bf16.msra.mxu0 %v206
    %263 = vmatprep.subr.bf16.mxu0 0
    %264 = vmatpush1.bf16.msra.mxu0 %v207
    %265 = vmatprep.subr.bf16.mxu0 0
    %266 = vmatpush1.bf16.msra.mxu0 %v208
    %267 = vmatprep.subr.bf16.mxu0 0
    %268 = vmatpush1.bf16.msra.mxu0 %v209
    %269 = vmatprep.subr.bf16.mxu0 0
    %270 = vmatpush1.bf16.msra.mxu0 %v210
    %271 = vmatprep.subr.bf16.mxu0 0
    %272 = vmatpush1.bf16.msra.mxu0 %v211
    %273 = vmatprep.subr.bf16.mxu0 0
    %274 = vmatpush1.bf16.msra.mxu0 %v212
    %275 = vmatprep.subr.bf16.mxu0 0
    %276 = vmatpush1.bf16.msra.mxu0 %v213
    %277 = vmatprep.subr.bf16.mxu0 0
    %278 = vmatpush1.bf16.msra.mxu0 %v214
    %279 = vmatprep.subr.bf16.mxu0 0
    %280 = vmatpush1.bf16.msra.mxu0 0
    %281 = vmatprep.subr.bf16.mxu0 0
    %282 = vmatpush1.bf16.msra.mxu0 0
    %283 = vmatprep.subr.bf16.mxu0 0
    %284 = vmatpush1.bf16.msra.mxu0 0
    %285 = vmatprep.subr.bf16.mxu0 0
    %286 = vmatpush1.bf16.msra.mxu0 0
    %287 = vmatprep.subr.bf16.mxu0 0
    %288 = vmatpush1.bf16.msra.mxu0 0
    %289 = vmatprep.subr.bf16.mxu0 0
    %290 = vmatpush1.bf16.msra.mxu0 0
    %291 = vmatprep.mubr.bf16.mxu0 %v254
    %292 = vmatmul.mubr.bf16.gmra.mrb[0].mxu0 %v247
    %v293 = vpop.f32.mrb[0].mxu0
    %v294 = vadd.f32 %v218, %v293
    %v295 = vpop.f32.mrb[0].mxu0
    %v296 = vpop.f32.mrb[0].mxu0
    %v297 = vadd.f32 %v223, %v296
    %v298 = vpop.f32.mrb[0].mxu0
    %299 = vmatprep.mubr.bf16.mxu0 %v257
    %300 = vmatmul.mubr.bf16.gmra.mrb[0].mxu0 %v249
    %v301 = vpop.f32.mrb[0].mxu0
    %v302 = vadd.f32 %v228, %v301
    %v303 = vpop.f32.mrb[0].mxu0
    %v304 = vpop.f32.mrb[0].mxu0
    %v305 = vadd.f32 %v233, %v304
    %v306 = vpop.f32.mrb[0].mxu0
    %307 = vdwg.mxu0
    %v308 = vmul.f32 %v294, 0.01
    %v309 = vmul.f32 %v297, 0.01
    %v310 = vmul.f32 %v302, 0.01
    %v311 = vmul.f32 %v305, 0.01
    %v312 = vmax.f32 %v294, %v308
    %v313 = vmax.f32 %v297, %v309
    %v314 = vmax.f32 %v302, %v310
    %v315 = vmax.f32 %v305, %v311
    %s316 = smul.addr %s52, 4
    %s317 = scalar_lea.vmem %s4, %s316
    %v318 = vld [vmem:[%s317] sm:$0xff]
    %v319 = vld [vmem:[%s317 + $0x8] sm:$0xff]
    %v320 = vld [vmem:[%s317 + $0x10] sm:$0xff]
    %v321 = vld [vmem:[%s317 + $0x18] sm:$0xff]
    %s322 = scalar_lea.vmem %s5, %s59
    %v323 = vld [vmem:[%s322] sm:$0xff]
    %v324 = vld [vmem:[%s322 + $0x8] sm:$0xff]
    %v325 = vld [vmem:[%s322 + $0x10] sm:$0xff]
    %v326 = vld [vmem:[%s322 + $0x18] sm:$0xff]
    %331 = vrot.lane.b32.xlu0 %v312, 2
    %v332 = vpop.permute.xlu0 %331
    %333 = vrot.lane.b32.xlu0 %v313, 2
    %v334 = vpop.permute.xlu0 %333
    %335 = vrot.lane.b32.xlu0 %v314, 2
    %v336 = vpop.permute.xlu0 %335
    %337 = vrot.lane.b32.xlu0 %v315, 2
    %v338 = vpop.permute.xlu0 %337
    %v343 = vsel %vm81, 0.0, %v332
    %v344 = vsel %vm81, 0.0, %v334
    %v345 = vsel %vm81, 0.0, %v336
    %v346 = vsel %vm81, 0.0, %v338
    %v347 = vld [vmem:[%s1] sm:$0x1]
    %v349 = vlaneseq
    %v350 = vshrl.u32 %v349, 7
    %v351 = vsub.s32 0, %v350
    %v352 = vrot.slane %v347, %v351
    %v354 = vmul.f32 %v343, %v352
    %v355 = vmul.f32 %v344, %v352
    %v356 = vmul.f32 %v345, %v352
    %v357 = vmul.f32 %v346, %v352
    %v358 = vpack.c.bf16 %v355, %v354
    %v359 = vpack.c.bf16 %v357, %v356
    %360 = vst.msk [vmem:[#allocation2] sm:$0xff] %vm99, %v358
    %361 = vst.msk [vmem:[#allocation2 + $0x8] sm:$0xff] %vm99, %v359
    %362 = vrot.lane.b32.xlu0 %v312, 1
    %v363 = vpop.permute.xlu0 %362
    %364 = vrot.lane.b32.xlu0 %v313, 1
    %v365 = vpop.permute.xlu0 %364
    %366 = vrot.lane.b32.xlu0 %v314, 1
    %v367 = vpop.permute.xlu0 %366
    %368 = vrot.lane.b32.xlu0 %v315, 1
    %v369 = vpop.permute.xlu0 %368
    %v374 = vsel %vm114, 0.0, %v363
    %v375 = vsel %vm114, 0.0, %v365
    %v376 = vsel %vm114, 0.0, %v367
    %v377 = vsel %vm114, 0.0, %v369
    %v378 = vld [vmem:[%s119] sm:$0x1]
    %v380 = vlaneseq
    %v381 = vshrl.u32 %v380, 7
    %v382 = vsub.s32 0, %v381
    %v383 = vrot.slane %v378, %v382
    %v385 = vmul.f32 %v374, %v383
    %v386 = vmul.f32 %v375, %v383
    %v387 = vmul.f32 %v376, %v383
    %v388 = vmul.f32 %v377, %v383
    %v389 = vpack.c.bf16 %v386, %v385
    %v390 = vpack.c.bf16 %v388, %v387
    %391 = vst.msk [vmem:[#allocation2 + $0x10] sm:$0xff] %vm99, %v389
    %392 = vst.msk [vmem:[#allocation2 + $0x18] sm:$0xff] %vm99, %v390
    %v393 = vpack.c.bf16 %v313, %v312
    %v394 = vpack.c.bf16 %v315, %v314
    %395 = vst.msk [vmem:[#allocation2 + $0x20] sm:$0xff] %vm99, %v393
    %396 = vst.msk [vmem:[#allocation2 + $0x28] sm:$0xff] %vm99, %v394
    %397 = vrot.lane.b32.xlu0 %v312, 127
    %v398 = vpop.permute.xlu0 %397
    %399 = vrot.lane.b32.xlu0 %v313, 127
    %v400 = vpop.permute.xlu0 %399
    %401 = vrot.lane.b32.xlu0 %v314, 127
    %v402 = vpop.permute.xlu0 %401
    %403 = vrot.lane.b32.xlu0 %v315, 127
    %v404 = vpop.permute.xlu0 %403
    %v409 = vsel %vm151, %v398, 0.0
    %v410 = vsel %vm151, %v400, 0.0
    %v411 = vsel %vm151, %v402, 0.0
    %v412 = vsel %vm151, %v404, 0.0
    %v413 = vld [vmem:[%s156] sm:$0x1]
    %v415 = vlaneseq
    %v416 = vshrl.u32 %v415, 7
    %v417 = vsub.s32 0, %v416
    %v418 = vrot.slane %v413, %v417
    %v420 = vmul.f32 %v409, %v418
    %v421 = vmul.f32 %v410, %v418
    %v422 = vmul.f32 %v411, %v418
    %v423 = vmul.f32 %v412, %v418
    %v424 = vpack.c.bf16 %v421, %v420
    %v425 = vpack.c.bf16 %v423, %v422
    %426 = vst.msk [vmem:[#allocation2 + $0x30] sm:$0xff] %vm99, %v424
    %427 = vst.msk [vmem:[#allocation2 + $0x38] sm:$0xff] %vm99, %v425
    %428 = vrot.lane.b32.xlu0 %v312, 126
    %v429 = vpop.permute.xlu0 %428
    %430 = vrot.lane.b32.xlu0 %v313, 126
    %v431 = vpop.permute.xlu0 %430
    %432 = vrot.lane.b32.xlu0 %v314, 126
    %v433 = vpop.permute.xlu0 %432
    %434 = vrot.lane.b32.xlu0 %v315, 126
    %v435 = vpop.permute.xlu0 %434
    %v440 = vsel %vm184, %v429, 0.0
    %v441 = vsel %vm184, %v431, 0.0
    %v442 = vsel %vm184, %v433, 0.0
    %v443 = vsel %vm184, %v435, 0.0
    %v444 = vld [vmem:[%s189] sm:$0x1]
    %v446 = vlaneseq
    %v447 = vshrl.u32 %v446, 7
    %v448 = vsub.s32 0, %v447
    %v449 = vrot.slane %v444, %v448
    %v451 = vmul.f32 %v440, %v449
    %v452 = vmul.f32 %v441, %v449
    %v453 = vmul.f32 %v442, %v449
    %v454 = vmul.f32 %v443, %v449
    %v455 = vpack.c.bf16 %v452, %v451
    %v456 = vpack.c.bf16 %v454, %v453
    %457 = vst.msk [vmem:[#allocation2 + $0x40] sm:$0xff] %vm99, %v455
    %458 = vst.msk [vmem:[#allocation2 + $0x48] sm:$0xff] %vm99, %v456
    %v459 = vld [vmem:[#allocation2] sm:$0xff]
    %v460 = vld [vmem:[#allocation2 + $0x8] sm:$0xff]
    %v461 = vld [vmem:[#allocation2 + $0x10] sm:$0xff]
    %v462 = vld [vmem:[#allocation2 + $0x18] sm:$0xff]
    %v463 = vld [vmem:[#allocation2 + $0x20] sm:$0xff]
    %v464 = vld [vmem:[#allocation2 + $0x28] sm:$0xff]
    %v465 = vld [vmem:[#allocation2 + $0x30] sm:$0xff]
    %v466 = vld [vmem:[#allocation2 + $0x38] sm:$0xff]
    %v467 = vld [vmem:[#allocation2 + $0x40] sm:$0xff]
    %v468 = vld [vmem:[#allocation2 + $0x48] sm:$0xff]
    %470 = vset.pattern.permute.xlu0 0
    %471 = vperm.xlu0 %470, %v323
    %v472 = vpop.permute.xlu0 %471
    %475 = vset.pattern.permute.xlu0 0
    %476 = vperm.xlu0 %475, %v324
    %v477 = vpop.permute.xlu0 %476
    %480 = vset.pattern.permute.xlu0 0
    %481 = vperm.xlu0 %480, %v325
    %v482 = vpop.permute.xlu0 %481
    %485 = vset.pattern.permute.xlu0 0
    %486 = vperm.xlu0 %485, %v326
    %v487 = vpop.permute.xlu0 %486
    %v493 = vunpack.c.l.b16 %v318
    %v494 = vunpack.c.h.b16 %v318
    %v495 = vunpack.c.l.b16 %v319
    %v496 = vunpack.c.h.b16 %v319
    %v497 = vunpack.c.l.b16 %v320
    %v498 = vunpack.c.h.b16 %v320
    %v499 = vunpack.c.l.b16 %v321
    %v500 = vunpack.c.h.b16 %v321
    %v501 = vpack.c.b16 %v495, %v493
    %v502 = vpack.c.b16 %v496, %v494
    %v503 = vpack.c.b16 %v499, %v497
    %v504 = vpack.c.b16 %v500, %v498
    %v508 = vsel %vm99, %v502, 0
    %v511 = vsel %vm99, %v504, 0
    %513 = vmatprep.subr.bf16.mxu0 0
    %514 = vmatpush1.bf16.msra.mxu0 %v459
    %515 = vmatprep.subr.bf16.mxu0 0
    %516 = vmatpush1.bf16.msra.mxu0 %v460
    %517 = vmatprep.subr.bf16.mxu0 0
    %518 = vmatpush1.bf16.msra.mxu0 %v461
    %519 = vmatprep.subr.bf16.mxu0 0
    %520 = vmatpush1.bf16.msra.mxu0 %v462
    %521 = vmatprep.subr.bf16.mxu0 0
    %522 = vmatpush1.bf16.msra.mxu0 %v463
    %523 = vmatprep.subr.bf16.mxu0 0
    %524 = vmatpush1.bf16.msra.mxu0 %v464
    %525 = vmatprep.subr.bf16.mxu0 0
    %526 = vmatpush1.bf16.msra.mxu0 %v465
    %527 = vmatprep.subr.bf16.mxu0 0
    %528 = vmatpush1.bf16.msra.mxu0 %v466
    %529 = vmatprep.subr.bf16.mxu0 0
    %530 = vmatpush1.bf16.msra.mxu0 %v467
    %531 = vmatprep.subr.bf16.mxu0 0
    %532 = vmatpush1.bf16.msra.mxu0 %v468
    %533 = vmatprep.subr.bf16.mxu0 0
    %534 = vmatpush1.bf16.msra.mxu0 0
    %535 = vmatprep.subr.bf16.mxu0 0
    %536 = vmatpush1.bf16.msra.mxu0 0
    %537 = vmatprep.subr.bf16.mxu0 0
    %538 = vmatpush1.bf16.msra.mxu0 0
    %539 = vmatprep.subr.bf16.mxu0 0
    %540 = vmatpush1.bf16.msra.mxu0 0
    %541 = vmatprep.subr.bf16.mxu0 0
    %542 = vmatpush1.bf16.msra.mxu0 0
    %543 = vmatprep.subr.bf16.mxu0 0
    %544 = vmatpush1.bf16.msra.mxu0 0
    %545 = vmatprep.mubr.bf16.mxu0 %v508
    %546 = vmatmul.mubr.bf16.gmra.mrb[0].mxu0 %v501
    %v547 = vpop.f32.mrb[0].mxu0
    %v548 = vadd.f32 %v472, %v547
    %v549 = vpop.f32.mrb[0].mxu0
    %v550 = vpop.f32.mrb[0].mxu0
    %v551 = vadd.f32 %v477, %v550
    %v552 = vpop.f32.mrb[0].mxu0
    %553 = vmatprep.mubr.bf16.mxu0 %v511
    %554 = vmatmul.mubr.bf16.gmra.mrb[0].mxu0 %v503
    %v555 = vpop.f32.mrb[0].mxu0
    %v556 = vadd.f32 %v482, %v555
    %v557 = vpop.f32.mrb[0].mxu0
    %v558 = vpop.f32.mrb[0].mxu0
    %v559 = vadd.f32 %v487, %v558
    %v560 = vpop.f32.mrb[0].mxu0
    %561 = vdwg.mxu0
    %v562 = vmul.f32 %v548, 0.3
    %v563 = vmul.f32 %v551, 0.3
    %v564 = vmul.f32 %v556, 0.3
    %v565 = vmul.f32 %v559, 0.3
    %v566 = vadd.f32 %v40, %v562
    %v567 = vadd.f32 %v41, %v563
    %v568 = vadd.f32 %v42, %v564
    %v569 = vadd.f32 %v43, %v565
  $region38: #{generator_forward.3} parent=0 // loop_footer
    %s39 = sadd.s32 1, %s35
  $region39: #{generator_forward.3} parent=0 // loop_footer_branch
    %34 = sbr.rel target = $region35
  $region40: #{generator_forward.3} parent=0 // loop_exit
    _
  %v570 = vld [vmem:[%s6] sm:$0x3]
  %v571 = vpack.c.bf16 %v41, %v40
  %v572 = vpack.c.bf16 %v43, %v42
  %v573 = vld [vmem:[%s7] sm:$0xf]
  %575 = vset.pattern.permute.xlu0 0
  %576 = vperm.xlu0 %575, %v573
  %v577 = vpop.permute.xlu0 %576
  %vm579 = vcmask 261120
  %v581 = vsel %vm579, %v570, 0
  %583 = vmatprep.subr.bf16.mxu0 0
  %584 = vmatpush1.bf16.msra.mxu0 %v571
  %585 = vmatprep.subr.bf16.mxu0 0
  %586 = vmatpush1.bf16.msra.mxu0 %v572
  %587 = vmatprep.subr.bf16.mxu0 0
  %588 = vmatpush1.bf16.msra.mxu0 0
  %589 = vmatprep.subr.bf16.mxu0 0
  %590 = vmatpush1.bf16.msra.mxu0 0
  %591 = vmatprep.subr.bf16.mxu0 0
  %592 = vmatpush1.bf16.msra.mxu0 0
  %593 = vmatprep.subr.bf16.mxu0 0
  %594 = vmatpush1.bf16.msra.mxu0 0
  %595 = vmatprep.subr.bf16.mxu0 0
  %596 = vmatpush1.bf16.msra.mxu0 0
  %597 = vmatprep.subr.bf16.mxu0 0
  %598 = vmatpush1.bf16.msra.mxu0 0
  %599 = vmatprep.subr.bf16.mxu0 0
  %600 = vmatpush1.bf16.msra.mxu0 0
  %601 = vmatprep.subr.bf16.mxu0 0
  %602 = vmatpush1.bf16.msra.mxu0 0
  %603 = vmatprep.subr.bf16.mxu0 0
  %604 = vmatpush1.bf16.msra.mxu0 0
  %605 = vmatprep.subr.bf16.mxu0 0
  %606 = vmatpush1.bf16.msra.mxu0 0
  %607 = vmatprep.subr.bf16.mxu0 0
  %608 = vmatpush1.bf16.msra.mxu0 0
  %609 = vmatprep.subr.bf16.mxu0 0
  %610 = vmatpush1.bf16.msra.mxu0 0
  %611 = vmatprep.subr.bf16.mxu0 0
  %612 = vmatpush1.bf16.msra.mxu0 0
  %613 = vmatprep.subr.bf16.mxu0 0
  %614 = vmatpush1.bf16.msra.mxu0 0
  %615 = vmatprep.mubr.bf16.mxu0 0
  %616 = vmatmul.mubr.bf16.gmra.mrb[0].mxu0 %v581
  %v617 = vpop.f32.mrb[0].mxu0
  %v618 = vadd.f32 %v577, %v617
  %v619 = vpop.f32.mrb[0].mxu0
  %v620 = vpop.f32.mrb[0].mxu0
  %v621 = vpop.f32.mrb[0].mxu0
  %622 = vdwg.mxu0
  %vm623 = vcmask 257024
  %v624 = vsel %vm623, %v618, -inf
  %v625 = vrot.slane %v624, 4
  %v626 = vmax.f32 %v624, %v625
  %v627 = vrot.slane %v626, 2
  %v628 = vmax.f32 %v626, %v627
  %v629 = vrot.slane %v628, 1
  %v630 = vmax.f32 %v628, %v629
  %v631 = vsub.f32 %v618, %v630
  %v632 = vmul.f32 %v631, 1.442695
  %v633 = vpow.pop %v632
  %v634 = vsel %vm623, %v633, 0.0
  %v635 = vrot.slane %v634, 4
  %v636 = vadd.f32 %v634, %v635
  %v637 = vrot.slane %v636, 2
  %v638 = vadd.f32 %v636, %v637
  %v639 = vrot.slane %v638, 1
  %v640 = vadd.f32 %v638, %v639
  %v641 = vrcp.pop %v640
  %v642 = vmul.f32 %v633, %v641
  %643 = vst.msk [vmem:[%s8] sm:$0xf] %vm623, %v642
  // Predicated region
  $region41: #{generator_forward.3} parent=0 // pred_check
    _
  $region42: #{generator_forward.3} parent=0 // pred_check_branch
    %645 = sbr.rel (0) target = $region44
  $region43: #{generator_forward.3} parent=0 // pred_region
    _
  $region44: #{generator_forward.3} parent=0 // pred_fallthru
    _
  // Predicated region
  $region45: #{generator_forward.3} parent=0 // pred_check
    _
  $region46: #{generator_forward.3} parent=0 // pred_check_branch
    %647 = sbr.rel (0) target = $region48
  $region47: #{generator_forward.3} parent=0 // pred_region
    _
  $region48: #{generator_forward.3} parent=0 // pred_fallthru
    _

</llo_original>
